<compile_context>
chip_gen: v7x
topology: tpu7x:2x2x1
jax: 0.10.0
libtpu: 0.0.40
codegen_flags: <defaults>
</compile_context>

<pallas_src>
import functools

import jax
import jax.numpy as jnp
from jax.experimental import pallas as pl
from jax.experimental.pallas import tpu as pltpu


def make_divisible(v, divisor=8, min_value=None):
    if min_value is None:
        min_value = divisor
    new_v = max(min_value, int(v + divisor / 2) // divisor * divisor)
    if new_v < 0.9 * v:
        new_v += divisor
    return new_v


def _dynamic_se_kernel(x_ref, wr_ref, br_ref, we_ref, be_ref, o_ref, *, inv_hw):
    # x_ref : (1, C, HW)   one batch element: channels on sublanes, pixels on lanes
    # wr_ref: (num_mid, C) reduce 1x1-conv weight slice (untransposed, (out, in))
    # br_ref: (num_mid, 1)
    # we_ref: (C, num_mid) expand 1x1-conv weight slice (untransposed, (out, in))
    # be_ref: (C, 1)
    # o_ref : (1, C, HW)
    x = x_ref[0].astype(jnp.float32)                              # (C, HW)

    # Global average pool over the spatial (lane) axis.
    pooled = jnp.sum(x, axis=1, keepdims=True) * inv_hw           # (C, 1)

    # "reduce" 1x1 conv == Wr @ pooled (column-vector form, no transpose needed).
    y = jnp.dot(wr_ref[...].astype(jnp.float32), pooled,
                preferred_element_type=jnp.float32)
    y = y + br_ref[...].astype(jnp.float32)                       # (num_mid, 1)
    y = jnp.maximum(y, 0.0)                                       # ReLU

    # "expand" 1x1 conv == We @ y.
    y = jnp.dot(we_ref[...].astype(jnp.float32), y,
                preferred_element_type=jnp.float32)
    y = y + be_ref[...].astype(jnp.float32)                       # (C, 1)

    # Hsigmoid: relu6(y + 3) / 6.
    y = jnp.clip(y + 3.0, 0.0, 6.0) * (1.0 / 6.0)

    # Channel-wise scale, broadcast along the lane (spatial) axis.
    o_ref[0] = (x * y).astype(o_ref.dtype)


def dynamic_se(x, reduce_weight, reduce_bias, expand_weight, expand_bias,
               reduction):
    """Pallas equivalent of DynamicSE.forward (weight_sharing=True).

    x             : (B, C, H, W), C <= max_channel
    reduce_weight : (num_mid_max, max_channel, 1, 1)  shared 'reduce' conv weight
    reduce_bias   : (num_mid_max,)
    expand_weight : (max_channel, num_mid_max, 1, 1)  shared 'expand' conv weight
    expand_bias   : (max_channel,)
    reduction     : static Python int (0 => identity, matching the module)
    """
    if reduction == 0:
        return x

    B, C, H, W = x.shape
    num_mid = make_divisible(int(C // reduction), divisor=8)

    # Static slices of the shared weights, kept in native (out, in) layout:
    # no transpose, no extra weight HBM round-trip before the kernel.
    wr = reduce_weight[:num_mid, :C, 0, 0]             # (num_mid, C)
    br = reduce_bias[:num_mid].reshape(num_mid, 1)     # (num_mid, 1)
    we = expand_weight[:C, :num_mid, 0, 0]             # (C, num_mid)
    be = expand_bias[:C].reshape(C, 1)                 # (C, 1)

    hw = H * W
    x3 = x.reshape(B, C, hw)

    itemsize = x.dtype.itemsize
    flops = B * (2 * C * hw + 4 * C * num_mid + 5 * C)
    bytes_accessed = (2 * B * C * hw * itemsize
                      + (wr.size + we.size) * wr.dtype.itemsize
                      + (br.size + be.size) * br.dtype.itemsize)

    out = pl.pallas_call(
        functools.partial(_dynamic_se_kernel, inv_hw=float(1.0 / hw)),
        out_shape=jax.ShapeDtypeStruct((B, C, hw), x.dtype),
        grid_spec=pl.GridSpec(
            grid=(B,),
            in_specs=[
                pl.BlockSpec((1, C, hw), lambda b: (b, 0, 0)),
                pl.BlockSpec((num_mid, C), lambda b: (0, 0)),
                pl.BlockSpec((num_mid, 1), lambda b: (0, 0)),
                pl.BlockSpec((C, num_mid), lambda b: (0, 0)),
                pl.BlockSpec((C, 1), lambda b: (0, 0)),
            ],
            out_specs=pl.BlockSpec((1, C, hw), lambda b: (b, 0, 0)),
        ),
        compiler_params=pltpu.CompilerParams(
            dimension_semantics=("parallel",)),
        cost_estimate=pl.CostEstimate(
            flops=flops, transcendentals=0, bytes_accessed=bytes_accessed),
    )(x3, wr, br, we, be)

    return out.reshape(B, C, H, W)


if __name__ == "__main__":
    # DynamicSE(channel_list=[16, 32], reduction_list=[0, 4], weight_sharing=True)
    channel_list = [16, 32]
    reduction_list = [0, 4]
    max_channel = max(channel_list)                               # 32
    min_reduction = min(r for r in reduction_list if r > 0)       # 4
    num_mid_max = make_divisible(max_channel // min_reduction, 8) # 8

    key = jax.random.PRNGKey(0)
    k_rw, k_rb, k_ew, k_eb, k_x = jax.random.split(key, 5)

    # Deterministic nn.Conv2d-style uniform init bounds.
    r_bound = 1.0 / (max_channel ** 0.5)
    e_bound = 1.0 / (num_mid_max ** 0.5)
    reduce_weight = jax.random.uniform(k_rw, (num_mid_max, max_channel, 1, 1),
                                       jnp.float32, -r_bound, r_bound)
    reduce_bias = jax.random.uniform(k_rb, (num_mid_max,), jnp.float32,
                                     -r_bound, r_bound)
    expand_weight = jax.random.uniform(k_ew, (max_channel, num_mid_max, 1, 1),
                                       jnp.float32, -e_bound, e_bound)
    expand_bias = jax.random.uniform(k_eb, (max_channel,), jnp.float32,
                                     -e_bound, e_bound)

    # Input uses the smaller channel count (16) to exercise the dynamic slicing.
    B, C, H, W = 2, 16, 8, 8
    reduction = 4
    x = jax.random.normal(k_x, (B, C, H, W), jnp.float32)

    y = dynamic_se(x, reduce_weight, reduce_bias, expand_weight, expand_bias,
                   reduction)
    y = jax.block_until_ready(y)

    # Pure-JAX reference (same math as the PyTorch forward).
    num_mid = make_divisible(C // reduction, 8)
    pooled = x.mean(axis=(2, 3))                                      # (B, C)
    t = pooled @ reduce_weight[:num_mid, :C, 0, 0].T + reduce_bias[:num_mid]
    t = jnp.maximum(t, 0.0)
    t = t @ expand_weight[:C, :num_mid, 0, 0].T + expand_bias[:C]
    t = jnp.clip(t + 3.0, 0.0, 6.0) / 6.0
    y_ref = x * t[:, :, None, None]

    assert y.shape == x.shape
    assert jnp.allclose(y, y_ref, atol=1e-5, rtol=1e-5)
    print("KERNEL_OK")
</pallas_src>

<mosaic_0001>
module attributes {stable_mosaic.version = 11 : i64} {
  func.func @_dynamic_se_kernel(%arg0: i32, %arg1: memref<1x16x64xf32, #tpu.memory_space<vmem>>, %arg2: memref<8x16xf32, #tpu.memory_space<vmem>>, %arg3: memref<8x1xf32, #tpu.memory_space<vmem>>, %arg4: memref<16x8xf32, #tpu.memory_space<vmem>>, %arg5: memref<16x1xf32, #tpu.memory_space<vmem>>, %arg6: memref<1x16x64xf32, #tpu.memory_space<vmem>>) attributes {dimension_semantics = [#tpu.dimension_semantics<parallel>], iteration_bounds = array<i64: 2>, scalar_prefetch = 0 : i64, scratch_operands = 0 : i64, tpu.core_type = #tpu.core_type<tc>, window_params = [{transform_indices = @transform_0, window_bounds = array<i64: 1, 16, 64>}, {pipeline_mode = #tpu.pipeline_mode<synchronous>, transform_indices = @transform_1, window_bounds = array<i64: 8, 16>}, {pipeline_mode = #tpu.pipeline_mode<synchronous>, transform_indices = @transform_2, window_bounds = array<i64: 8, 1>}, {pipeline_mode = #tpu.pipeline_mode<synchronous>, transform_indices = @transform_3, window_bounds = array<i64: 16, 8>}, {pipeline_mode = #tpu.pipeline_mode<synchronous>, transform_indices = @transform_4, window_bounds = array<i64: 16, 1>}, {transform_indices = @transform_5, window_bounds = array<i64: 1, 16, 64>}]} {
    %c0 = arith.constant 0 : index
    %c0_0 = arith.constant 0 : index
    %c0_1 = arith.constant 0 : index
    %0 = vector.load %arg1[%c0, %c0_0, %c0_1] : memref<1x16x64xf32, #tpu.memory_space<vmem>>, vector<1x16x64xf32>
    %1 = vector.shape_cast %0 : vector<1x16x64xf32> to vector<16x64xf32>
    %cst = arith.constant dense<0.000000e+00> : vector<16xf32>
    %2 = vector.multi_reduction <add>, %1, %cst [1] : vector<16x64xf32> to vector<16xf32>
    %3 = vector.shape_cast %2 : vector<16xf32> to vector<16x1xf32>
    %cst_2 = arith.constant 1.562500e-02 : f32
    %4 = vector.broadcast %cst_2 : f32 to vector<16x1xf32>
    %5 = arith.mulf %3, %4 : vector<16x1xf32>
    %c0_3 = arith.constant 0 : index
    %c0_4 = arith.constant 0 : index
    %6 = vector.load %arg2[%c0_3, %c0_4] : memref<8x16xf32, #tpu.memory_space<vmem>>, vector<8x16xf32>
    %cst_5 = arith.constant dense<0.000000e+00> : vector<8x1xf32>
    %7 = tpu.matmul %6, %5, %cst_5 {dimension_numbers = #tpu.dot_dimension_numbers<[1], [0], [0], [1], [0, 0, 1, 1], [], []>} : vector<8x16xf32>, vector<16x1xf32>, vector<8x1xf32> -> vector<8x1xf32>
    %c0_6 = arith.constant 0 : index
    %c0_7 = arith.constant 0 : index
    %8 = vector.load %arg3[%c0_6, %c0_7] : memref<8x1xf32, #tpu.memory_space<vmem>>, vector<8x1xf32>
    %9 = arith.addf %7, %8 : vector<8x1xf32>
    %cst_8 = arith.constant 0.000000e+00 : f32
    %10 = vector.broadcast %cst_8 : f32 to vector<8x1xf32>
    %11 = arith.maximumf %9, %10 : vector<8x1xf32>
    %c0_9 = arith.constant 0 : index
    %c0_10 = arith.constant 0 : index
    %12 = vector.load %arg4[%c0_9, %c0_10] : memref<16x8xf32, #tpu.memory_space<vmem>>, vector<16x8xf32>
    %cst_11 = arith.constant dense<0.000000e+00> : vector<16x1xf32>
    %13 = tpu.matmul %12, %11, %cst_11 {dimension_numbers = #tpu.dot_dimension_numbers<[1], [0], [0], [1], [0, 0, 1, 1], [], []>} : vector<16x8xf32>, vector<8x1xf32>, vector<16x1xf32> -> vector<16x1xf32>
    %c0_12 = arith.constant 0 : index
    %c0_13 = arith.constant 0 : index
    %14 = vector.load %arg5[%c0_12, %c0_13] : memref<16x1xf32, #tpu.memory_space<vmem>>, vector<16x1xf32>
    %15 = arith.addf %13, %14 : vector<16x1xf32>
    %cst_14 = arith.constant 3.000000e+00 : f32
    %16 = vector.broadcast %cst_14 : f32 to vector<16x1xf32>
    %17 = arith.addf %15, %16 : vector<16x1xf32>
    %cst_15 = arith.constant 0.000000e+00 : f32
    %cst_16 = arith.constant 6.000000e+00 : f32
    %18 = vector.broadcast %cst_15 : f32 to vector<16x1xf32>
    %19 = arith.maximumf %18, %17 : vector<16x1xf32>
    %20 = vector.broadcast %cst_16 : f32 to vector<16x1xf32>
    %21 = arith.minimumf %20, %19 : vector<16x1xf32>
    %cst_17 = arith.constant 0.166666672 : f32
    %22 = vector.broadcast %cst_17 : f32 to vector<16x1xf32>
    %23 = arith.mulf %21, %22 : vector<16x1xf32>
    %24 = vector.broadcast %23 : vector<16x1xf32> to vector<16x64xf32>
    %25 = arith.mulf %1, %24 : vector<16x64xf32>
    %c0_18 = arith.constant 0 : index
    %c0_19 = arith.constant 0 : index
    %c0_20 = arith.constant 0 : index
    %26 = vector.load %arg6[%c0_18, %c0_19, %c0_20] : memref<1x16x64xf32, #tpu.memory_space<vmem>>, vector<1x16x64xf32>
    %27 = vector.shape_cast %26 : vector<1x16x64xf32> to vector<16x64xf32>
    %28 = vector.shape_cast %25 : vector<16x64xf32> to vector<1x16x64xf32>
    tpu.vector_store %arg6[%c0_18, %c0_19, %c0_20], %28 {strides = array<i32>} : memref<1x16x64xf32, #tpu.memory_space<vmem>>, vector<1x16x64xf32>,
    return
  }
  func.func @transform_0(%arg0: i32) -> (i32, i32, i32) {
    %c0_i32 = arith.constant 0 : i32
    %c0_i32_0 = arith.constant 0 : i32
    %c0_i32_1 = arith.constant 0 : i32
    return %arg0, %c0_i32, %c0_i32_0 : i32, i32, i32
  }
  func.func @transform_1(%arg0: i32) -> (i32, i32) {
    %c0_i32 = arith.constant 0 : i32
    %c0_i32_0 = arith.constant 0 : i32
    %c0_i32_1 = arith.constant 0 : i32
    return %c0_i32, %c0_i32_0 : i32, i32
  }
  func.func @transform_2(%arg0: i32) -> (i32, i32) {
    %c0_i32 = arith.constant 0 : i32
    %c0_i32_0 = arith.constant 0 : i32
    %c0_i32_1 = arith.constant 0 : i32
    return %c0_i32, %c0_i32_0 : i32, i32
  }
  func.func @transform_3(%arg0: i32) -> (i32, i32) {
    %c0_i32 = arith.constant 0 : i32
    %c0_i32_0 = arith.constant 0 : i32
    %c0_i32_1 = arith.constant 0 : i32
    return %c0_i32, %c0_i32_0 : i32, i32
  }
  func.func @transform_4(%arg0: i32) -> (i32, i32) {
    %c0_i32 = arith.constant 0 : i32
    %c0_i32_0 = arith.constant 0 : i32
    %c0_i32_1 = arith.constant 0 : i32
    return %c0_i32, %c0_i32_0 : i32, i32
  }
  func.func @transform_5(%arg0: i32) -> (i32, i32, i32) {
    %c0_i32 = arith.constant 0 : i32
    %c0_i32_0 = arith.constant 0 : i32
    %c0_i32_1 = arith.constant 0 : i32
    return %arg0, %c0_i32, %c0_i32_0 : i32, i32, i32
  }
}

</mosaic_0001>

<llo_original>
// kernel: tpu_custom_call.1
$region0: #{tpu_custom_call.1}
  #allocation0 [shape = 'u32[]', space=smem, size = 0x4, offset = 0x4, fixed_abs, tag = 'smem constant byte address 0x4 - core index']
  #allocation1 [shape = 'u32[144,128]{1,0:T(1,128)}', space=vmem, size = 0x12000, scoped, tag = 'internal scratch']
  %s0 = inlined_call_operand.vmem [shape: f32[2,16,64], index: 0, kind: input, shape index: {}]
  %s1 = inlined_call_operand.vmem [shape: f32[8,16], index: 1, kind: input, shape index: {}]
  %s2 = inlined_call_operand.vmem [shape: f32[8,1], index: 2, kind: input, shape index: {}]
  %s3 = inlined_call_operand.vmem [shape: f32[16,8], index: 3, kind: input, shape index: {}]
  %s4 = inlined_call_operand.vmem [shape: f32[16,1], index: 4, kind: input, shape index: {}]
  %s5 = inlined_call_operand.hbm [shape: f32[2,16,64], index: 5, kind: output, shape index: {}]
  %s6 = sld [smem:[#allocation0]]
  $region53: #{tpu_custom_call.1} parent=0
    _
  %s8 = ssub.s32 1, %s6
  %s9 = scalar_select 0, %s8, %s6
  $region1: #{tpu_custom_call.1} parent=0
    #allocation2 [shape = 'u8[16384]{0}', space=vmem, size = 0x4000, scoped, tag = 'output window, operand 0']
    #allocation3 [shape = 's32[2]{0}', space=sflag, size = 0x8, scoped, tag = 'scoped memory for tpu_custom_call.1']
    %10 = vsyncpa [#allocation3], 0
    %s11 = scalar_lea.sflag [#allocation3], 1
    %12 = vsyncpa %s11, 0
    loop: start=0, step=1, limit=4
    $region2: #{tpu_custom_call.1} parent=1 // loop_pre_header
      _
    $region3: #{tpu_custom_call.1} parent=1 // loop_header
      %s14 = sphi 0, %s18
      %p15 = scmp.ge.s32.totalorder %s14, 4
      %s24 = sphi 0, %s26
      %s27 = sphi 0, %s24
      %s28 = sphi 0, %s27
      %s44 = sphi 0, %s28
      %s48 = sphi 0, %s48
      %s50 = sphi 0, %s48
      %s51 = sphi 0, %s50
      %s65 = sphi 0, %s51
      %s69 = sphi 0, %s69
      %s71 = sphi 0, %s69
      %s72 = sphi 0, %s71
      %s86 = sphi 0, %s72
      %s90 = sphi 0, %s90
      %s92 = sphi 0, %s90
      %s93 = sphi 0, %s92
      %s107 = sphi 0, %s93
      %s111 = sphi 0, %s111
      %s113 = sphi 0, %s111
      %s114 = sphi 0, %s113
      %s128 = sphi 0, %s114
      %s134 = sphi 0, %s136
      %s137 = sphi 0, %s134
      %s138 = sphi 0, %s137
      %s154 = sphi 0, %s138
    $region4: #{tpu_custom_call.1} parent=1 // loop_header_branch
      %17 = sbr.rel (%p15) target = $region8
    $region5: #{tpu_custom_call.1} parent=1 // loop_body
      %s19 = ssub.s32 %s14, 1
      %s20 = ssub.s32 %s14, 2
      %s21 = sadd.s32 %s14, 1
      %s22 = ssub.s32 %s14, %s21
      %p23 = scmp.eq.s32.totalorder %s22, 0
      %s25 = sadd.s32 %s24, 1
      %s26 = scalar_select %p23, %s24, %s25
      %p29 = pneg %p23
      %p30 = scmp.eq.s32.totalorder %s14, 1
      %p31 = por %p29, %p30
      %p32 = scmp.ne.s32.totalorder %s24, %s27
      %p33 = scmp.eq.s32.totalorder %s14, 0
      %p34 = por %p32, %p33
      %p35 = scmp.ne.s32.totalorder %s24, %s27
      %p36 = scmp.eq.s32.totalorder %s19, 1
      %p37 = por %p35, %p36
      %p38 = scmp.ne.s32.totalorder %s27, %s28
      %p39 = scmp.eq.s32.totalorder %s19, 0
      %p40 = por %p38, %p39
      %p41 = scmp.ne.s32.totalorder %s27, %s28
      %p42 = scmp.eq.s32.totalorder %s20, 1
      %p43 = por %p41, %p42
      %p45 = scmp.ne.s32.totalorder %s28, %s44
      %p46 = scmp.eq.s32.totalorder %s20, 0
      %p47 = por %p45, %p46
      %s49 = sadd.s32 %s48, 1
      %p52 = scmp.eq.s32.totalorder %s14, 1
      %p53 = scmp.ne.s32.totalorder %s48, %s50
      %p54 = scmp.eq.s32.totalorder %s14, 0
      %p55 = por %p53, %p54
      %p56 = scmp.ne.s32.totalorder %s48, %s50
      %p57 = scmp.eq.s32.totalorder %s19, 1
      %p58 = por %p56, %p57
      %p59 = scmp.ne.s32.totalorder %s50, %s51
      %p60 = scmp.eq.s32.totalorder %s19, 0
      %p61 = por %p59, %p60
      %p62 = scmp.ne.s32.totalorder %s50, %s51
      %p63 = scmp.eq.s32.totalorder %s20, 1
      %p64 = por %p62, %p63
      %p66 = scmp.ne.s32.totalorder %s51, %s65
      %p67 = scmp.eq.s32.totalorder %s20, 0
      %p68 = por %p66, %p67
      %s70 = sadd.s32 %s69, 1
      %p73 = scmp.eq.s32.totalorder %s14, 1
      %p74 = scmp.ne.s32.totalorder %s69, %s71
      %p75 = scmp.eq.s32.totalorder %s14, 0
      %p76 = por %p74, %p75
      %p77 = scmp.ne.s32.totalorder %s69, %s71
      %p78 = scmp.eq.s32.totalorder %s19, 1
      %p79 = por %p77, %p78
      %p80 = scmp.ne.s32.totalorder %s71, %s72
      %p81 = scmp.eq.s32.totalorder %s19, 0
      %p82 = por %p80, %p81
      %p83 = scmp.ne.s32.totalorder %s71, %s72
      %p84 = scmp.eq.s32.totalorder %s20, 1
      %p85 = por %p83, %p84
      %p87 = scmp.ne.s32.totalorder %s72, %s86
      %p88 = scmp.eq.s32.totalorder %s20, 0
      %p89 = por %p87, %p88
      %s91 = sadd.s32 %s90, 1
      %p94 = scmp.eq.s32.totalorder %s14, 1
      %p95 = scmp.ne.s32.totalorder %s90, %s92
      %p96 = scmp.eq.s32.totalorder %s14, 0
      %p97 = por %p95, %p96
      %p98 = scmp.ne.s32.totalorder %s90, %s92
      %p99 = scmp.eq.s32.totalorder %s19, 1
      %p100 = por %p98, %p99
      %p101 = scmp.ne.s32.totalorder %s92, %s93
      %p102 = scmp.eq.s32.totalorder %s19, 0
      %p103 = por %p101, %p102
      %p104 = scmp.ne.s32.totalorder %s92, %s93
      %p105 = scmp.eq.s32.totalorder %s20, 1
      %p106 = por %p104, %p105
      %p108 = scmp.ne.s32.totalorder %s93, %s107
      %p109 = scmp.eq.s32.totalorder %s20, 0
      %p110 = por %p108, %p109
      %s112 = sadd.s32 %s111, 1
      %p115 = scmp.eq.s32.totalorder %s14, 1
      %p116 = scmp.ne.s32.totalorder %s111, %s113
      %p117 = scmp.eq.s32.totalorder %s14, 0
      %p118 = por %p116, %p117
      %p119 = scmp.ne.s32.totalorder %s111, %s113
      %p120 = scmp.eq.s32.totalorder %s19, 1
      %p121 = por %p119, %p120
      %p122 = scmp.ne.s32.totalorder %s113, %s114
      %p123 = scmp.eq.s32.totalorder %s19, 0
      %p124 = por %p122, %p123
      %p125 = scmp.ne.s32.totalorder %s113, %s114
      %p126 = scmp.eq.s32.totalorder %s20, 1
      %p127 = por %p125, %p126
      %p129 = scmp.ne.s32.totalorder %s114, %s128
      %p130 = scmp.eq.s32.totalorder %s20, 0
      %p131 = por %p129, %p130
      %s132 = ssub.s32 %s14, %s21
      %p133 = scmp.eq.s32.totalorder %s132, 0
      %s135 = sadd.s32 %s134, 1
      %s136 = scalar_select %p133, %s134, %s135
      %p139 = pneg %p133
      %p140 = scmp.eq.s32.totalorder %s14, 1
      %p141 = por %p139, %p140
      %p142 = scmp.ne.s32.totalorder %s134, %s137
      %p143 = scmp.eq.s32.totalorder %s14, 0
      %p144 = por %p142, %p143
      %p145 = scmp.ne.s32.totalorder %s134, %s137
      %p146 = scmp.eq.s32.totalorder %s19, 1
      %p147 = por %p145, %p146
      %p148 = scmp.ne.s32.totalorder %s137, %s138
      %p149 = scmp.eq.s32.totalorder %s19, 0
      %p150 = por %p148, %p149
      %p151 = scmp.ne.s32.totalorder %s137, %s138
      %p152 = scmp.eq.s32.totalorder %s20, 1
      %p153 = por %p151, %p152
      %p155 = scmp.ne.s32.totalorder %s138, %s154
      %p156 = scmp.eq.s32.totalorder %s20, 0
      %p157 = por %p155, %p156
      %p158 = scmp.le.s32.totalorder 1, %s14
      %p159 = scmp.lt.s32.totalorder %s14, 3
      %p160 = pnand %p158, %p159
      %p161 = pneg %p160
      // Predicated region
      $region9: #{tpu_custom_call.1} parent=5 // pred_check
        _
      $region10: #{tpu_custom_call.1} parent=5 // pred_check_branch
        %163 = sbr.rel (%p160) target = $region12
      $region11: #{tpu_custom_call.1} parent=5 // pred_region
        %s164 = ssub.s32 %s14, 1
        // Predicated region
        $region13: #{tpu_custom_call.1} parent=11 // pred_check
          %p165 = pneg %p61
        $region14: #{tpu_custom_call.1} parent=11 // pred_check_branch
          %167 = sbr.rel (%p165) target = $region16
        $region15: #{tpu_custom_call.1} parent=11 // pred_region
          _
        $region16: #{tpu_custom_call.1} parent=11 // pred_fallthru
          _
        // Predicated region
        $region17: #{tpu_custom_call.1} parent=11 // pred_check
          %p168 = pneg %p82
        $region18: #{tpu_custom_call.1} parent=11 // pred_check_branch
          %170 = sbr.rel (%p168) target = $region20
        $region19: #{tpu_custom_call.1} parent=11 // pred_region
          _
        $region20: #{tpu_custom_call.1} parent=11 // pred_fallthru
          _
        // Predicated region
        $region21: #{tpu_custom_call.1} parent=11 // pred_check
          %p171 = pneg %p103
        $region22: #{tpu_custom_call.1} parent=11 // pred_check_branch
          %173 = sbr.rel (%p171) target = $region24
        $region23: #{tpu_custom_call.1} parent=11 // pred_region
          _
        $region24: #{tpu_custom_call.1} parent=11 // pred_fallthru
          _
        // Predicated region
        $region25: #{tpu_custom_call.1} parent=11 // pred_check
          %p174 = pneg %p124
        $region26: #{tpu_custom_call.1} parent=11 // pred_check_branch
          %176 = sbr.rel (%p174) target = $region28
        $region27: #{tpu_custom_call.1} parent=11 // pred_region
          _
        $region28: #{tpu_custom_call.1} parent=11 // pred_fallthru
          _
      $region12: #{tpu_custom_call.1} parent=5 // pred_fallthru
        _
      %p177 = scmp.lt.s32.totalorder %s14, 2
      // Predicated region
      $region29: #{tpu_custom_call.1} parent=5 // pred_check
        %p178 = pneg %p177
      $region30: #{tpu_custom_call.1} parent=5 // pred_check_branch
        %180 = sbr.rel (%p178) target = $region32
      $region31: #{tpu_custom_call.1} parent=5 // pred_region
        // Predicated region
        $region33: #{tpu_custom_call.1} parent=31 // pred_check
          %p181 = pneg %p34
        $region34: #{tpu_custom_call.1} parent=31 // pred_check_branch
          %183 = sbr.rel (%p181) target = $region36
        $region35: #{tpu_custom_call.1} parent=31 // pred_region
          %p184 = scmp.lt.s32.totalorder %s14, 1
          %s185 = scalar_select %p184, %s14, 1
          %s186 = smul.addr %s185, 2
          %s187 = smul.addr %s186, 8
          %s188 = scalar_lea.vmem %s0, %s187
        $region36: #{tpu_custom_call.1} parent=31 // pred_fallthru
          _
      $region32: #{tpu_custom_call.1} parent=5 // pred_fallthru
        _
      %p189 = scmp.le.s32.totalorder 1, %s14
      %p190 = scmp.lt.s32.totalorder %s14, 3
      %p191 = pnand %p189, %p190
      %p192 = pneg %p191
      // Predicated region
      $region37: #{tpu_custom_call.1} parent=5 // pred_check
        _
      $region38: #{tpu_custom_call.1} parent=5 // pred_check_branch
        %194 = sbr.rel (%p191) target = $region40
      $region39: #{tpu_custom_call.1} parent=5 // pred_region
        %s195 = ssub.s32 %s14, 1
        %p196 = scmp.lt.s32.totalorder %s19, 1
        %s197 = scalar_select %p196, %s19, 1
        %s198 = smul.addr %s197, 2
        %s199 = smul.addr %s198, 8
        %s200 = scalar_lea.vmem %s0, %s199
        %p201 = pneg %p40
        %p202 = pneg %p37
        %p203 = pneg %p61
        %p204 = pneg %p58
        %p205 = pneg %p82
        %p206 = pneg %p79
        %p207 = pneg %p103
        %p208 = pneg %p100
        %p209 = pneg %p124
        %p210 = pneg %p121
        %p211 = pneg %p150
        %p212 = pneg %p147
        %s213 = sand.u32 %s137, 1
        %s214 = scalar_lea.sflag [#allocation3], %s213
        %s215 = sand.u32 %s137, 1
        %s216 = smul.addr %s215, 16
        %s217 = scalar_lea.vmem [#allocation2], %s216
        %p218 = scmp.lt.s32.totalorder %s19, 1
        %s219 = scalar_select %p218, %s19, 1
        %s220 = smul.addr %s219, 2
        %s221 = smul.addr %s220, 8
        %s222 = scalar_lea.vmem %s0, %s221
        %v223 = vld [vmem:[%s222] sm:$0xff]
        %v224 = vld [vmem:[%s222 + $0x8] sm:$0xff]
        %vm225 = vcmask 523264
        %v226 = vsel %vm225, %v223, 0.0
        %227 = vadd.xlane.f32.xlu0 %v226
        %v228 = vpop.xlane.xlu0 %227
        %v229 = vsel %vm225, %v224, 0.0
        %230 = vadd.xlane.f32.xlu0 %v229
        %v231 = vpop.xlane.xlu0 %230
        %v232 = vmul.f32 %v228, 0.015625
        %v233 = vmul.f32 %v231, 0.015625
        %v234 = vld [vmem:[%s1] sm:$0xff]
        %v235 = vld [vmem:[%s2] sm:$0xff]
        %vm236 = vcmask 130048
        %v238 = vsel %vm236, %v234, 0
        %240 = vmatprep.subr.mxu0 0.0
        %241 = vmatpush1.msra.mxu0 %v232
        %242 = vmatprep.subr.mxu0 0.0
        %243 = vmatpush1.msra.mxu0 %v233
        %244 = vmatprep.subr.mxu0 0.0
        %245 = vmatpush1.msra.mxu0 0.0
        %246 = vmatprep.subr.mxu0 0.0
        %247 = vmatpush1.msra.mxu0 0.0
        %248 = vmatprep.subr.mxu0 0.0
        %249 = vmatpush1.msra.mxu0 0.0
        %250 = vmatprep.subr.mxu0 0.0
        %251 = vmatpush1.msra.mxu0 0.0
        %252 = vmatprep.subr.mxu0 0.0
        %253 = vmatpush1.msra.mxu0 0.0
        %254 = vmatprep.subr.mxu0 0.0
        %255 = vmatpush1.msra.mxu0 0.0
        %256 = vmatprep.subr.mxu0 0.0
        %257 = vmatpush1.msra.mxu0 0.0
        %258 = vmatprep.subr.mxu0 0.0
        %259 = vmatpush1.msra.mxu0 0.0
        %260 = vmatprep.subr.mxu0 0.0
        %261 = vmatpush1.msra.mxu0 0.0
        %262 = vmatprep.subr.mxu0 0.0
        %263 = vmatpush1.msra.mxu0 0.0
        %264 = vmatprep.subr.mxu0 0.0
        %265 = vmatpush1.msra.mxu0 0.0
        %266 = vmatprep.subr.mxu0 0.0
        %267 = vmatpush1.msra.mxu0 0.0
        %268 = vmatprep.subr.mxu0 0.0
        %269 = vmatpush1.msra.mxu0 0.0
        %270 = vmatprep.subr.mxu0 0.0
        %271 = vmatpush1.msra.mxu0 0.0
        %272 = vmatprep.subr.mxu0 0.0
        %273 = vmatpush1.msra.mxu0 0.0
        %274 = vmatprep.subr.mxu0 0.0
        %275 = vmatpush1.msra.mxu0 0.0
        %276 = vmatprep.subr.mxu0 0.0
        %277 = vmatpush1.msra.mxu0 0.0
        %278 = vmatprep.subr.mxu0 0.0
        %279 = vmatpush1.msra.mxu0 0.0
        %280 = vmatprep.subr.mxu0 0.0
        %281 = vmatpush1.msra.mxu0 0.0
        %282 = vmatprep.subr.mxu0 0.0
        %283 = vmatpush1.msra.mxu0 0.0
        %284 = vmatprep.subr.mxu0 0.0
        %285 = vmatpush1.msra.mxu0 0.0
        %286 = vmatprep.subr.mxu0 0.0
        %287 = vmatpush1.msra.mxu0 0.0
        %288 = vmatprep.subr.mxu0 0.0
        %289 = vmatpush1.msra.mxu0 0.0
        %290 = vmatprep.subr.mxu0 0.0
        %291 = vmatpush1.msra.mxu0 0.0
        %292 = vmatprep.subr.mxu0 0.0
        %293 = vmatpush1.msra.mxu0 0.0
        %294 = vmatprep.subr.mxu0 0.0
        %295 = vmatpush1.msra.mxu0 0.0
        %296 = vmatprep.subr.mxu0 0.0
        %297 = vmatpush1.msra.mxu0 0.0
        %298 = vmatprep.subr.mxu0 0.0
        %299 = vmatpush1.msra.mxu0 0.0
        %300 = vmatprep.subr.mxu0 0.0
        %301 = vmatpush1.msra.mxu0 0.0
        %302 = vmatprep.subr.mxu0 0.0
        %303 = vmatpush1.msra.mxu0 0.0
        %304 = vmatprep.mubr.f32.mxu0 0.0
        %305 = vmatmul.mubr.f32.gmra.mrb[0].mxu0 %v238
        %v306 = vpop.f32.mrb[0].mxu0
        %v307 = vadd.f32 %v235, %v306
        %v308 = vpop.f32.mrb[0].mxu0
        %309 = vdwg.mxu0
        %v310 = vmax.f32 %v307, 0.0
        %v311 = vld [vmem:[%s3] sm:$0xff]
        %v312 = vld [vmem:[%s3 + $0x8] sm:$0xff]
        %v313 = vld [vmem:[%s4] sm:$0xff]
        %v314 = vld [vmem:[%s4 + $0x8] sm:$0xff]
        %vm315 = vcmask 64512
        %v317 = vsel %vm315, %v311, 0
        %v320 = vsel %vm315, %v312, 0
        %322 = vmatprep.subr.mxu0 0.0
        %323 = vmatpush1.msra.mxu0 %v310
        %324 = vmatprep.subr.mxu0 0.0
        %325 = vmatpush1.msra.mxu0 0.0
        %326 = vmatprep.subr.mxu0 0.0
        %327 = vmatpush1.msra.mxu0 0.0
        %328 = vmatprep.subr.mxu0 0.0
        %329 = vmatpush1.msra.mxu0 0.0
        %330 = vmatprep.subr.mxu0 0.0
        %331 = vmatpush1.msra.mxu0 0.0
        %332 = vmatprep.subr.mxu0 0.0
        %333 = vmatpush1.msra.mxu0 0.0
        %334 = vmatprep.subr.mxu0 0.0
        %335 = vmatpush1.msra.mxu0 0.0
        %336 = vmatprep.subr.mxu0 0.0
        %337 = vmatpush1.msra.mxu0 0.0
        %338 = vmatprep.subr.mxu0 0.0
        %339 = vmatpush1.msra.mxu0 0.0
        %340 = vmatprep.subr.mxu0 0.0
        %341 = vmatpush1.msra.mxu0 0.0
        %342 = vmatprep.subr.mxu0 0.0
        %343 = vmatpush1.msra.mxu0 0.0
        %344 = vmatprep.subr.mxu0 0.0
        %345 = vmatpush1.msra.mxu0 0.0
        %346 = vmatprep.subr.mxu0 0.0
        %347 = vmatpush1.msra.mxu0 0.0
        %348 = vmatprep.subr.mxu0 0.0
        %349 = vmatpush1.msra.mxu0 0.0
        %350 = vmatprep.subr.mxu0 0.0
        %351 = vmatpush1.msra.mxu0 0.0
        %352 = vmatprep.subr.mxu0 0.0
        %353 = vmatpush1.msra.mxu0 0.0
        %354 = vmatprep.subr.mxu0 0.0
        %355 = vmatpush1.msra.mxu0 0.0
        %356 = vmatprep.subr.mxu0 0.0
        %357 = vmatpush1.msra.mxu0 0.0
        %358 = vmatprep.subr.mxu0 0.0
        %359 = vmatpush1.msra.mxu0 0.0
        %360 = vmatprep.subr.mxu0 0.0
        %361 = vmatpush1.msra.mxu0 0.0
        %362 = vmatprep.subr.mxu0 0.0
        %363 = vmatpush1.msra.mxu0 0.0
        %364 = vmatprep.subr.mxu0 0.0
        %365 = vmatpush1.msra.mxu0 0.0
        %366 = vmatprep.subr.mxu0 0.0
        %367 = vmatpush1.msra.mxu0 0.0
        %368 = vmatprep.subr.mxu0 0.0
        %369 = vmatpush1.msra.mxu0 0.0
        %370 = vmatprep.subr.mxu0 0.0
        %371 = vmatpush1.msra.mxu0 0.0
        %372 = vmatprep.subr.mxu0 0.0
        %373 = vmatpush1.msra.mxu0 0.0
        %374 = vmatprep.subr.mxu0 0.0
        %375 = vmatpush1.msra.mxu0 0.0
        %376 = vmatprep.subr.mxu0 0.0
        %377 = vmatpush1.msra.mxu0 0.0
        %378 = vmatprep.subr.mxu0 0.0
        %379 = vmatpush1.msra.mxu0 0.0
        %380 = vmatprep.subr.mxu0 0.0
        %381 = vmatpush1.msra.mxu0 0.0
        %382 = vmatprep.subr.mxu0 0.0
        %383 = vmatpush1.msra.mxu0 0.0
        %384 = vmatprep.subr.mxu0 0.0
        %385 = vmatpush1.msra.mxu0 0.0
        %386 = vmatprep.mubr.f32.mxu0 0.0
        %387 = vmatmul.mubr.f32.gmra.mrb[0].mxu0 %v317
        %v388 = vpop.f32.mrb[0].mxu0
        %v389 = vadd.f32 %v313, %v388
        %v390 = vpop.f32.mrb[0].mxu0
        %391 = vmatprep.mubr.f32.mxu0 0.0
        %392 = vmatmul.mubr.f32.gmra.mrb[0].mxu0 %v320
        %v393 = vpop.f32.mrb[0].mxu0
        %v394 = vadd.f32 %v314, %v393
        %v395 = vpop.f32.mrb[0].mxu0
        %396 = vdwg.mxu0
        %v397 = vadd.f32 %v389, 3.0
        %v398 = vadd.f32 %v394, 3.0
        %v399 = vmax.f32 %v397, 0.0
        %v400 = vmax.f32 %v398, 0.0
        %v401 = vmin.f32 %v399, 6.0
        %v402 = vmin.f32 %v400, 6.0
        %v403 = vmul.f32 %v401, 0.16666667
        %v404 = vmul.f32 %v402, 0.16666667
        %406 = vset.pattern.permute.xlu0 0
        %407 = vperm.xlu0 %406, %v403
        %v408 = vpop.permute.xlu0 %407
        %411 = vset.pattern.permute.xlu0 0
        %412 = vperm.xlu0 %411, %v404
        %v413 = vpop.permute.xlu0 %412
        %v415 = vmul.f32 %v223, %v408
        %v416 = vmul.f32 %v224, %v413
        %417 = vst.msk [vmem:[%s217] sm:$0xff] %vm225, %v415
        %418 = vst.msk [vmem:[%s217 + $0x8] sm:$0xff] %vm225, %v416
        %s419 = sand.u32 %s137, 1
        %s420 = scalar_lea.sflag [#allocation3], %s419
        %s421 = sand.u32 %s137, 1
        %s422 = smul.addr %s421, 16
        %s423 = scalar_lea.vmem [#allocation2], %s422
        // Predicated region
        $region41: #{tpu_custom_call.1} parent=39 // pred_check
          %p424 = pneg %p147
        $region42: #{tpu_custom_call.1} parent=39 // pred_check_branch
          %426 = sbr.rel (%p424) target = $region44
        $region43: #{tpu_custom_call.1} parent=39 // pred_region
          %s428 = ssub.s32 256, 256
          %429 = vsyncadd %s420, %s428
          %s430 = smul.addr %s19, 2
          %s431 = smul.addr %s430, 128
          %s432 = scalar_lea.hbm %s5, %s431
          %s433 = sshll.u32 %s423, 4
          %s434 = int_to_ptr.vmem [resolvable:$true] %s433
          %439 = dma.vmem_to_hbm [thread:$0]  %s434, 256, %s432, %s420, 128, 128, 8
        $region44: #{tpu_custom_call.1} parent=39 // pred_fallthru
          _
      $region40: #{tpu_custom_call.1} parent=5 // pred_fallthru
        _
      %p440 = scmp.le.s32.totalorder 2, %s14
      // Predicated region
      $region45: #{tpu_custom_call.1} parent=5 // pred_check
        %p441 = pneg %p440
      $region46: #{tpu_custom_call.1} parent=5 // pred_check_branch
        %443 = sbr.rel (%p441) target = $region48
      $region47: #{tpu_custom_call.1} parent=5 // pred_region
        %s444 = ssub.s32 %s14, 2
        // Predicated region
        $region49: #{tpu_custom_call.1} parent=47 // pred_check
          %p445 = pneg %p153
        $region50: #{tpu_custom_call.1} parent=47 // pred_check_branch
          %447 = sbr.rel (%p445) target = $region52
        $region51: #{tpu_custom_call.1} parent=47 // pred_region
          %s448 = sand.u32 %s138, 1
          %s449 = scalar_lea.sflag [#allocation3], %s448
          %s450 = sand.u32 %s138, 1
          %s451 = smul.addr %s450, 16
          %s452 = scalar_lea.vmem [#allocation2], %s451
          %453 = dma.done %s449, 256
        $region52: #{tpu_custom_call.1} parent=47 // pred_fallthru
          _
      $region48: #{tpu_custom_call.1} parent=5 // pred_fallthru
        _
    $region6: #{tpu_custom_call.1} parent=1 // loop_footer
      %s18 = sadd.s32 1, %s14
    $region7: #{tpu_custom_call.1} parent=1 // loop_footer_branch
      %13 = sbr.rel target = $region3
    $region8: #{tpu_custom_call.1} parent=1 // loop_exit
      _
    %454 = vsyncpa [#allocation3], 1
    %s455 = scalar_lea.sflag [#allocation3], 1
    %456 = vsyncpa %s455, 1

</llo_original>
